<compile_context>
chip_gen: v5e
topology: v5e:2x2
jax: 0.10.0
libtpu: 0.0.40
codegen_flags: <defaults>
</compile_context>

<pallas_src>
import jax
import jax.numpy as jnp
from jax.experimental import pallas as pl
from jax.experimental.pallas import tpu as pltpu

NEG_SLOPE = 0.01


def _leaky_relu(x):
    return jnp.where(x > 0, x, NEG_SLOPE * x)


def _mm(a, w_bf16):
    """bf16 MXU matmul with f32 accumulation; `a` may be f32 (cast in-kernel)."""
    return jnp.dot(a.astype(jnp.bfloat16), w_bf16,
                   preferred_element_type=jnp.float32)


# --------------------------- fused forward kernel ---------------------------

def _gcn_forward_kernel(
        # graph / feature inputs
        adj_ref, x_ref, gsrc_ref, gdst_ref, ea_ref,
        # GCNConv layers (weights bf16, biases f32)
        w1_ref, b1_ref, w2_ref, b2_ref, w3_ref, b3_ref,
        # edge encoder
        we_ref, be_ref,
        # edge_features MLP (first-layer weight pre-split -> no in-kernel concat)
        wfs_ref, wfd_ref, wfe_ref, bf0_ref, wf1_ref, bf1_ref,
        # merged trade-classifier / value-regressor heads
        wh0_ref, bh0_ref, wh1_ref, bh1_ref,
        # outputs
        final_ref, exists_ref):
    adj = adj_ref[...]                                   # [N, N] bf16, loaded once

    def gcn_layer(h, w_ref, b_ref):
        xw = _mm(h, w_ref[...])                          # [N, Cout] f32
        agg = jnp.dot(adj, xw.astype(jnp.bfloat16),
                      preferred_element_type=jnp.float32)
        return _leaky_relu(agg + b_ref[...])

    h1 = gcn_layer(x_ref[...], w1_ref, b1_ref)           # [N, h]
    h2 = gcn_layer(h1, w2_ref, b2_ref)                   # [N, 2h]
    h3 = gcn_layer(h2, w3_ref, b3_ref)                   # [N, 4h]

    # edge encoder: Linear + LeakyReLU
    edge_enc = _leaky_relu(_mm(ea_ref[...], we_ref[...]) + be_ref[...])   # [E, h]

    # endpoint gathers h3[src] / h3[dst] as one-hot MXU matmuls
    h3b = h3.astype(jnp.bfloat16)
    src_feat = jnp.dot(gsrc_ref[...], h3b, preferred_element_type=jnp.float32)
    dst_feat = jnp.dot(gdst_ref[...], h3b, preferred_element_type=jnp.float32)

    # edge_features MLP: concat([src, dst, enc]) @ W == sum of row-split matmuls
    cf = _leaky_relu(_mm(src_feat, wfs_ref[...]) + _mm(dst_feat, wfd_ref[...])
                     + _mm(edge_enc, wfe_ref[...]) + bf0_ref[...])        # [E, 2h]
    common = _mm(cf, wf1_ref[...]) + bf1_ref[...]                         # [E, h]

    # merged heads: one [h, 2h] matmul, then one block-diagonal [2h, 2] matmul
    hid = _leaky_relu(_mm(common, wh0_ref[...]) + bh0_ref[...])           # [E, 2h]
    z = _mm(hid, wh1_ref[...]) + bh1_ref[...]                             # [E, 2]
    trade_exists = jax.nn.sigmoid(z[:, 0:1])
    trade_value = z[:, 1:2]

    final_ref[...] = (trade_exists * trade_value).astype(final_ref.dtype)
    exists_ref[...] = trade_exists.astype(exists_ref.dtype)


_VMEM = pl.BlockSpec(memory_space=pltpu.MemorySpace.VMEM)


# ------------------------------ params / glue --------------------------------

def init_params(key, in_channels, hidden_channels, edge_feature_dim):
    """Deterministic synthetic init (kaiming-ish scaling), weights stored [in, out]."""
    h = hidden_channels

    def lin(key, fan_in, fan_out):
        kw, kb = jax.random.split(key)
        gain = jnp.sqrt(2.0 / (1.0 + NEG_SLOPE ** 2))
        std = gain / jnp.sqrt(float(fan_in))
        w = std * jax.random.normal(kw, (fan_in, fan_out), jnp.float32)
        b = 0.01 * jax.random.normal(kb, (1, fan_out), jnp.float32)
        return {"w": w, "b": b}

    keys = jax.random.split(key, 12)
    return {
        "conv1": lin(keys[0], in_channels, h),
        "conv2": lin(keys[1], h, 2 * h),
        "conv3": lin(keys[2], 2 * h, 4 * h),
        "edge_encoder": lin(keys[3], edge_feature_dim, h),
        "edge_features_0": lin(keys[4], 4 * h * 2 + h, 2 * h),
        "edge_features_1": lin(keys[5], 2 * h, h),
        "trade_cls_0": lin(keys[6], h, h),
        "trade_cls_1": lin(keys[7], h, 1),
        "value_reg_0": lin(keys[8], h, h),
        "value_reg_1": lin(keys[9], h, 1),
    }


def normalized_adjacency(edge_index, num_nodes):
    """Dense A_hat[dst, src] = d^-1/2[dst] * d^-1/2[src] with self loops,
    matching torch_geometric gcn_norm (add_remaining_self_loops: existing
    self-loops are NOT double counted — diagonal weight is exactly 1)."""
    src, dst = edge_index[0], edge_index[1]
    a = jnp.zeros((num_nodes, num_nodes), jnp.float32).at[dst, src].add(1.0)
    eye = jnp.eye(num_nodes, dtype=jnp.float32)
    a = a * (1.0 - eye) + eye                   # diagonal forced to exactly 1
    deg = a.sum(axis=1)
    d_inv_sqrt = jnp.where(deg > 0, jax.lax.rsqrt(deg), 0.0)
    return d_inv_sqrt[:, None] * a * d_inv_sqrt[None, :]


def _pad_rows(w, mult=8):
    r = w.shape[0]
    pad = (-r) % mult
    return jnp.pad(w, ((0, pad), (0, 0))) if pad else w


def _pad_cols(x, mult=8):
    c = x.shape[1]
    pad = (-c) % mult
    return jnp.pad(x, ((0, 0), (0, pad))) if pad else x


def gcn_forward(params, x, edge_index, edge_attr):
    n = x.shape[0]
    e = edge_attr.shape[0]
    h = params["conv1"]["w"].shape[1]
    bf16 = jnp.bfloat16

    # ---- plain-JAX glue: adjacency, one-hot gather matrices, weight packing ----
    adj = normalized_adjacency(edge_index, n).astype(bf16)        # [N, N]
    src, dst = edge_index[0], edge_index[1]
    gsrc = jax.nn.one_hot(src, n, dtype=bf16)                     # [E, N]
    gdst = jax.nn.one_hot(dst, n, dtype=bf16)                     # [E, N]

    # zero-pad contraction dims to multiples of 8 (exact, pads are zeros)
    x_p = _pad_cols(x)                                            # [N, ceil8(Cin)]
    ea_p = _pad_cols(edge_attr)                                   # [E, ceil8(F)]
    w1 = _pad_rows(params["conv1"]["w"]).astype(bf16)
    we = _pad_rows(params["edge_encoder"]["w"]).astype(bf16)

    # split edge_features_0 weight by input blocks (src | dst | edge_enc)
    wf = params["edge_features_0"]["w"]                           # [8h + h, 2h]
    wfs = wf[: 4 * h].astype(bf16)
    wfd = wf[4 * h: 8 * h].astype(bf16)
    wfe = wf[8 * h:].astype(bf16)

    # merged two-branch heads
    wh0 = jnp.concatenate([params["trade_cls_0"]["w"],
                           params["value_reg_0"]["w"]], axis=1).astype(bf16)   # [h, 2h]
    bh0 = jnp.concatenate([params["trade_cls_0"]["b"],
                           params["value_reg_0"]["b"]], axis=1)                # [1, 2h]
    wh1 = jnp.zeros((2 * h, 2), jnp.float32)
    wh1 = wh1.at[:h, 0:1].set(params["trade_cls_1"]["w"])
    wh1 = wh1.at[h:, 1:2].set(params["value_reg_1"]["w"])
    wh1 = wh1.astype(bf16)                                                     # [2h, 2]
    bh1 = jnp.concatenate([params["trade_cls_1"]["b"],
                           params["value_reg_1"]["b"]], axis=1)                # [1, 2]

    # ---- single fused Pallas kernel ----
    final_pred, trade_exists = pl.pallas_call(
        _gcn_forward_kernel,
        out_shape=(jax.ShapeDtypeStruct((e, 1), jnp.float32),
                   jax.ShapeDtypeStruct((e, 1), jnp.float32)),
        in_specs=[_VMEM] * 23,
        out_specs=(_VMEM, _VMEM),
        compiler_params=pltpu.CompilerParams(vmem_limit_bytes=64 << 20),
    )(
        adj, x_p, gsrc, gdst, ea_p,
        w1, params["conv1"]["b"],
        params["conv2"]["w"].astype(bf16), params["conv2"]["b"],
        params["conv3"]["w"].astype(bf16), params["conv3"]["b"],
        we, params["edge_encoder"]["b"],
        wfs, wfd, wfe, params["edge_features_0"]["b"],
        params["edge_features_1"]["w"].astype(bf16), params["edge_features_1"]["b"],
        wh0, bh0, wh1, bh1,
    )
    return final_pred, trade_exists


# ---------------------------------- main ------------------------------------

if __name__ == "__main__":
    IN_CHANNELS = 6
    HIDDEN = 8
    EDGE_FEAT_DIM = 4
    NUM_NODES = 16
    NUM_EDGES = 32

    key = jax.random.PRNGKey(0)
    k_par, k_x, k_src, k_dst, k_ea = jax.random.split(key, 5)

    params = init_params(k_par, IN_CHANNELS, HIDDEN, EDGE_FEAT_DIM)

    x = jax.random.normal(k_x, (NUM_NODES, IN_CHANNELS), jnp.float32)
    src = jax.random.randint(k_src, (NUM_EDGES,), 0, NUM_NODES, jnp.int32)
    dst = jax.random.randint(k_dst, (NUM_EDGES,), 0, NUM_NODES, jnp.int32)
    edge_index = jnp.stack([src, dst], axis=0)               # [2, E]
    edge_attr = jax.random.normal(k_ea, (NUM_EDGES, EDGE_FEAT_DIM), jnp.float32)

    final_pred, trade_exists = jax.jit(gcn_forward)(params, x, edge_index, edge_attr)
    jax.block_until_ready((final_pred, trade_exists))

    assert final_pred.shape == (NUM_EDGES, 1)
    assert trade_exists.shape == (NUM_EDGES, 1)
    assert bool(jnp.all(jnp.isfinite(final_pred)))
    assert bool(jnp.all((trade_exists >= 0.0) & (trade_exists <= 1.0)))
    print("KERNEL_OK")
</pallas_src>

<mosaic_0001>
module attributes {stable_mosaic.version = 11 : i64} {
  func.func @_gcn_forward_kernel(%arg0: memref<16x16xbf16, #tpu.memory_space<vmem>>, %arg1: memref<16x8xf32, #tpu.memory_space<vmem>>, %arg2: memref<32x16xbf16, #tpu.memory_space<vmem>>, %arg3: memref<32x16xbf16, #tpu.memory_space<vmem>>, %arg4: memref<32x8xf32, #tpu.memory_space<vmem>>, %arg5: memref<8x8xbf16, #tpu.memory_space<vmem>>, %arg6: memref<1x8xf32, #tpu.memory_space<vmem>>, %arg7: memref<8x16xbf16, #tpu.memory_space<vmem>>, %arg8: memref<1x16xf32, #tpu.memory_space<vmem>>, %arg9: memref<16x32xbf16, #tpu.memory_space<vmem>>, %arg10: memref<1x32xf32, #tpu.memory_space<vmem>>, %arg11: memref<8x8xbf16, #tpu.memory_space<vmem>>, %arg12: memref<1x8xf32, #tpu.memory_space<vmem>>, %arg13: memref<32x16xbf16, #tpu.memory_space<vmem>>, %arg14: memref<32x16xbf16, #tpu.memory_space<vmem>>, %arg15: memref<8x16xbf16, #tpu.memory_space<vmem>>, %arg16: memref<1x16xf32, #tpu.memory_space<vmem>>, %arg17: memref<16x8xbf16, #tpu.memory_space<vmem>>, %arg18: memref<1x8xf32, #tpu.memory_space<vmem>>, %arg19: memref<8x16xbf16, #tpu.memory_space<vmem>>, %arg20: memref<1x16xf32, #tpu.memory_space<vmem>>, %arg21: memref<16x2xbf16, #tpu.memory_space<vmem>>, %arg22: memref<1x2xf32, #tpu.memory_space<vmem>>, %arg23: memref<32x1xf32, #tpu.memory_space<vmem>>, %arg24: memref<32x1xf32, #tpu.memory_space<vmem>>) attributes {dimension_semantics = [], scalar_prefetch = 0 : i64, scratch_operands = 0 : i64, tpu.core_type = #tpu.core_type<tc>} {
    %c0 = arith.constant 0 : index
    %c0_0 = arith.constant 0 : index
    %0 = vector.load %arg0[%c0, %c0_0] : memref<16x16xbf16, #tpu.memory_space<vmem>>, vector<16x16xbf16>
    %c0_1 = arith.constant 0 : index
    %c0_2 = arith.constant 0 : index
    %1 = vector.load %arg1[%c0_1, %c0_2] : memref<16x8xf32, #tpu.memory_space<vmem>>, vector<16x8xf32>
    %c0_3 = arith.constant 0 : index
    %c0_4 = arith.constant 0 : index
    %2 = vector.load %arg5[%c0_3, %c0_4] : memref<8x8xbf16, #tpu.memory_space<vmem>>, vector<8x8xbf16>
    %3 = arith.truncf %1 : vector<16x8xf32> to vector<16x8xbf16>
    %cst = arith.constant dense<0.000000e+00> : vector<16x8xf32>
    %4 = tpu.matmul %3, %2, %cst {dimension_numbers = #tpu.dot_dimension_numbers<[1], [0], [0], [1], [0, 0, 1, 1], [], []>} : vector<16x8xbf16>, vector<8x8xbf16>, vector<16x8xf32> -> vector<16x8xf32>
    %5 = arith.truncf %4 : vector<16x8xf32> to vector<16x8xbf16>
    %cst_5 = arith.constant dense<0.000000e+00> : vector<16x8xf32>
    %6 = tpu.matmul %0, %5, %cst_5 {dimension_numbers = #tpu.dot_dimension_numbers<[1], [0], [0], [1], [0, 0, 1, 1], [], []>} : vector<16x16xbf16>, vector<16x8xbf16>, vector<16x8xf32> -> vector<16x8xf32>
    %c0_6 = arith.constant 0 : index
    %c0_7 = arith.constant 0 : index
    %7 = vector.load %arg6[%c0_6, %c0_7] : memref<1x8xf32, #tpu.memory_space<vmem>>, vector<1x8xf32>
    %8 = vector.broadcast %7 : vector<1x8xf32> to vector<16x8xf32>
    %9 = arith.addf %6, %8 : vector<16x8xf32>
    %cst_8 = arith.constant 0.000000e+00 : f32
    %10 = vector.broadcast %cst_8 : f32 to vector<16x8xf32>
    %11 = arith.cmpf ogt, %9, %10 : vector<16x8xf32>
    %cst_9 = arith.constant 0.00999999977 : f32
    %12 = vector.broadcast %cst_9 : f32 to vector<16x8xf32>
    %13 = arith.mulf %12, %9 : vector<16x8xf32>
    %14 = arith.select %11, %9, %13 : vector<16x8xi1>, vector<16x8xf32>
    %c0_10 = arith.constant 0 : index
    %c0_11 = arith.constant 0 : index
    %15 = vector.load %arg7[%c0_10, %c0_11] : memref<8x16xbf16, #tpu.memory_space<vmem>>, vector<8x16xbf16>
    %16 = arith.truncf %14 : vector<16x8xf32> to vector<16x8xbf16>
    %cst_12 = arith.constant dense<0.000000e+00> : vector<16x16xf32>
    %17 = tpu.matmul %16, %15, %cst_12 {dimension_numbers = #tpu.dot_dimension_numbers<[1], [0], [0], [1], [0, 0, 1, 1], [], []>} : vector<16x8xbf16>, vector<8x16xbf16>, vector<16x16xf32> -> vector<16x16xf32>
    %18 = arith.truncf %17 : vector<16x16xf32> to vector<16x16xbf16>
    %cst_13 = arith.constant dense<0.000000e+00> : vector<16x16xf32>
    %19 = tpu.matmul %0, %18, %cst_13 {dimension_numbers = #tpu.dot_dimension_numbers<[1], [0], [0], [1], [0, 0, 1, 1], [], []>} : vector<16x16xbf16>, vector<16x16xbf16>, vector<16x16xf32> -> vector<16x16xf32>
    %c0_14 = arith.constant 0 : index
    %c0_15 = arith.constant 0 : index
    %20 = vector.load %arg8[%c0_14, %c0_15] : memref<1x16xf32, #tpu.memory_space<vmem>>, vector<1x16xf32>
    %21 = vector.broadcast %20 : vector<1x16xf32> to vector<16x16xf32>
    %22 = arith.addf %19, %21 : vector<16x16xf32>
    %cst_16 = arith.constant 0.000000e+00 : f32
    %23 = vector.broadcast %cst_16 : f32 to vector<16x16xf32>
    %24 = arith.cmpf ogt, %22, %23 : vector<16x16xf32>
    %cst_17 = arith.constant 0.00999999977 : f32
    %25 = vector.broadcast %cst_17 : f32 to vector<16x16xf32>
    %26 = arith.mulf %25, %22 : vector<16x16xf32>
    %27 = arith.select %24, %22, %26 : vector<16x16xi1>, vector<16x16xf32>
    %c0_18 = arith.constant 0 : index
    %c0_19 = arith.constant 0 : index
    %28 = vector.load %arg9[%c0_18, %c0_19] : memref<16x32xbf16, #tpu.memory_space<vmem>>, vector<16x32xbf16>
    %29 = arith.truncf %27 : vector<16x16xf32> to vector<16x16xbf16>
    %cst_20 = arith.constant dense<0.000000e+00> : vector<16x32xf32>
    %30 = tpu.matmul %29, %28, %cst_20 {dimension_numbers = #tpu.dot_dimension_numbers<[1], [0], [0], [1], [0, 0, 1, 1], [], []>} : vector<16x16xbf16>, vector<16x32xbf16>, vector<16x32xf32> -> vector<16x32xf32>
    %31 = arith.truncf %30 : vector<16x32xf32> to vector<16x32xbf16>
    %cst_21 = arith.constant dense<0.000000e+00> : vector<16x32xf32>
    %32 = tpu.matmul %0, %31, %cst_21 {dimension_numbers = #tpu.dot_dimension_numbers<[1], [0], [0], [1], [0, 0, 1, 1], [], []>} : vector<16x16xbf16>, vector<16x32xbf16>, vector<16x32xf32> -> vector<16x32xf32>
    %c0_22 = arith.constant 0 : index
    %c0_23 = arith.constant 0 : index
    %33 = vector.load %arg10[%c0_22, %c0_23] : memref<1x32xf32, #tpu.memory_space<vmem>>, vector<1x32xf32>
    %34 = vector.broadcast %33 : vector<1x32xf32> to vector<16x32xf32>
    %35 = arith.addf %32, %34 : vector<16x32xf32>
    %cst_24 = arith.constant 0.000000e+00 : f32
    %36 = vector.broadcast %cst_24 : f32 to vector<16x32xf32>
    %37 = arith.cmpf ogt, %35, %36 : vector<16x32xf32>
    %cst_25 = arith.constant 0.00999999977 : f32
    %38 = vector.broadcast %cst_25 : f32 to vector<16x32xf32>
    %39 = arith.mulf %38, %35 : vector<16x32xf32>
    %40 = arith.select %37, %35, %39 : vector<16x32xi1>, vector<16x32xf32>
    %c0_26 = arith.constant 0 : index
    %c0_27 = arith.constant 0 : index
    %41 = vector.load %arg4[%c0_26, %c0_27] : memref<32x8xf32, #tpu.memory_space<vmem>>, vector<32x8xf32>
    %c0_28 = arith.constant 0 : index
    %c0_29 = arith.constant 0 : index
    %42 = vector.load %arg11[%c0_28, %c0_29] : memref<8x8xbf16, #tpu.memory_space<vmem>>, vector<8x8xbf16>
    %43 = arith.truncf %41 : vector<32x8xf32> to vector<32x8xbf16>
    %cst_30 = arith.constant dense<0.000000e+00> : vector<32x8xf32>
    %44 = tpu.matmul %43, %42, %cst_30 {dimension_numbers = #tpu.dot_dimension_numbers<[1], [0], [0], [1], [0, 0, 1, 1], [], []>} : vector<32x8xbf16>, vector<8x8xbf16>, vector<32x8xf32> -> vector<32x8xf32>
    %c0_31 = arith.constant 0 : index
    %c0_32 = arith.constant 0 : index
    %45 = vector.load %arg12[%c0_31, %c0_32] : memref<1x8xf32, #tpu.memory_space<vmem>>, vector<1x8xf32>
    %46 = vector.broadcast %45 : vector<1x8xf32> to vector<32x8xf32>
    %47 = arith.addf %44, %46 : vector<32x8xf32>
    %cst_33 = arith.constant 0.000000e+00 : f32
    %48 = vector.broadcast %cst_33 : f32 to vector<32x8xf32>
    %49 = arith.cmpf ogt, %47, %48 : vector<32x8xf32>
    %cst_34 = arith.constant 0.00999999977 : f32
    %50 = vector.broadcast %cst_34 : f32 to vector<32x8xf32>
    %51 = arith.mulf %50, %47 : vector<32x8xf32>
    %52 = arith.select %49, %47, %51 : vector<32x8xi1>, vector<32x8xf32>
    %53 = arith.truncf %40 : vector<16x32xf32> to vector<16x32xbf16>
    %c0_35 = arith.constant 0 : index
    %c0_36 = arith.constant 0 : index
    %54 = vector.load %arg2[%c0_35, %c0_36] : memref<32x16xbf16, #tpu.memory_space<vmem>>, vector<32x16xbf16>
    %cst_37 = arith.constant dense<0.000000e+00> : vector<32x32xf32>
    %55 = tpu.matmul %54, %53, %cst_37 {dimension_numbers = #tpu.dot_dimension_numbers<[1], [0], [0], [1], [0, 0, 1, 1], [], []>} : vector<32x16xbf16>, vector<16x32xbf16>, vector<32x32xf32> -> vector<32x32xf32>
    %c0_38 = arith.constant 0 : index
    %c0_39 = arith.constant 0 : index
    %56 = vector.load %arg3[%c0_38, %c0_39] : memref<32x16xbf16, #tpu.memory_space<vmem>>, vector<32x16xbf16>
    %cst_40 = arith.constant dense<0.000000e+00> : vector<32x32xf32>
    %57 = tpu.matmul %56, %53, %cst_40 {dimension_numbers = #tpu.dot_dimension_numbers<[1], [0], [0], [1], [0, 0, 1, 1], [], []>} : vector<32x16xbf16>, vector<16x32xbf16>, vector<32x32xf32> -> vector<32x32xf32>
    %c0_41 = arith.constant 0 : index
    %c0_42 = arith.constant 0 : index
    %58 = vector.load %arg13[%c0_41, %c0_42] : memref<32x16xbf16, #tpu.memory_space<vmem>>, vector<32x16xbf16>
    %59 = arith.truncf %55 : vector<32x32xf32> to vector<32x32xbf16>
    %cst_43 = arith.constant dense<0.000000e+00> : vector<32x16xf32>
    %60 = tpu.matmul %59, %58, %cst_43 {dimension_numbers = #tpu.dot_dimension_numbers<[1], [0], [0], [1], [0, 0, 1, 1], [], []>} : vector<32x32xbf16>, vector<32x16xbf16>, vector<32x16xf32> -> vector<32x16xf32>
    %c0_44 = arith.constant 0 : index
    %c0_45 = arith.constant 0 : index
    %61 = vector.load %arg14[%c0_44, %c0_45] : memref<32x16xbf16, #tpu.memory_space<vmem>>, vector<32x16xbf16>
    %62 = arith.truncf %57 : vector<32x32xf32> to vector<32x32xbf16>
    %cst_46 = arith.constant dense<0.000000e+00> : vector<32x16xf32>
    %63 = tpu.matmul %62, %61, %cst_46 {dimension_numbers = #tpu.dot_dimension_numbers<[1], [0], [0], [1], [0, 0, 1, 1], [], []>} : vector<32x32xbf16>, vector<32x16xbf16>, vector<32x16xf32> -> vector<32x16xf32>
    %64 = arith.addf %60, %63 : vector<32x16xf32>
    %c0_47 = arith.constant 0 : index
    %c0_48 = arith.constant 0 : index
    %65 = vector.load %arg15[%c0_47, %c0_48] : memref<8x16xbf16, #tpu.memory_space<vmem>>, vector<8x16xbf16>
    %66 = arith.truncf %52 : vector<32x8xf32> to vector<32x8xbf16>
    %cst_49 = arith.constant dense<0.000000e+00> : vector<32x16xf32>
    %67 = tpu.matmul %66, %65, %cst_49 {dimension_numbers = #tpu.dot_dimension_numbers<[1], [0], [0], [1], [0, 0, 1, 1], [], []>} : vector<32x8xbf16>, vector<8x16xbf16>, vector<32x16xf32> -> vector<32x16xf32>
    %68 = arith.addf %64, %67 : vector<32x16xf32>
    %c0_50 = arith.constant 0 : index
    %c0_51 = arith.constant 0 : index
    %69 = vector.load %arg16[%c0_50, %c0_51] : memref<1x16xf32, #tpu.memory_space<vmem>>, vector<1x16xf32>
    %70 = vector.broadcast %69 : vector<1x16xf32> to vector<32x16xf32>
    %71 = arith.addf %68, %70 : vector<32x16xf32>
    %cst_52 = arith.constant 0.000000e+00 : f32
    %72 = vector.broadcast %cst_52 : f32 to vector<32x16xf32>
    %73 = arith.cmpf ogt, %71, %72 : vector<32x16xf32>
    %cst_53 = arith.constant 0.00999999977 : f32
    %74 = vector.broadcast %cst_53 : f32 to vector<32x16xf32>
    %75 = arith.mulf %74, %71 : vector<32x16xf32>
    %76 = arith.select %73, %71, %75 : vector<32x16xi1>, vector<32x16xf32>
    %c0_54 = arith.constant 0 : index
    %c0_55 = arith.constant 0 : index
    %77 = vector.load %arg17[%c0_54, %c0_55] : memref<16x8xbf16, #tpu.memory_space<vmem>>, vector<16x8xbf16>
    %78 = arith.truncf %76 : vector<32x16xf32> to vector<32x16xbf16>
    %cst_56 = arith.constant dense<0.000000e+00> : vector<32x8xf32>
    %79 = tpu.matmul %78, %77, %cst_56 {dimension_numbers = #tpu.dot_dimension_numbers<[1], [0], [0], [1], [0, 0, 1, 1], [], []>} : vector<32x16xbf16>, vector<16x8xbf16>, vector<32x8xf32> -> vector<32x8xf32>
    %c0_57 = arith.constant 0 : index
    %c0_58 = arith.constant 0 : index
    %80 = vector.load %arg18[%c0_57, %c0_58] : memref<1x8xf32, #tpu.memory_space<vmem>>, vector<1x8xf32>
    %81 = vector.broadcast %80 : vector<1x8xf32> to vector<32x8xf32>
    %82 = arith.addf %79, %81 : vector<32x8xf32>
    %c0_59 = arith.constant 0 : index
    %c0_60 = arith.constant 0 : index
    %83 = vector.load %arg19[%c0_59, %c0_60] : memref<8x16xbf16, #tpu.memory_space<vmem>>, vector<8x16xbf16>
    %84 = arith.truncf %82 : vector<32x8xf32> to vector<32x8xbf16>
    %cst_61 = arith.constant dense<0.000000e+00> : vector<32x16xf32>
    %85 = tpu.matmul %84, %83, %cst_61 {dimension_numbers = #tpu.dot_dimension_numbers<[1], [0], [0], [1], [0, 0, 1, 1], [], []>} : vector<32x8xbf16>, vector<8x16xbf16>, vector<32x16xf32> -> vector<32x16xf32>
    %c0_62 = arith.constant 0 : index
    %c0_63 = arith.constant 0 : index
    %86 = vector.load %arg20[%c0_62, %c0_63] : memref<1x16xf32, #tpu.memory_space<vmem>>, vector<1x16xf32>
    %87 = vector.broadcast %86 : vector<1x16xf32> to vector<32x16xf32>
    %88 = arith.addf %85, %87 : vector<32x16xf32>
    %cst_64 = arith.constant 0.000000e+00 : f32
    %89 = vector.broadcast %cst_64 : f32 to vector<32x16xf32>
    %90 = arith.cmpf ogt, %88, %89 : vector<32x16xf32>
    %cst_65 = arith.constant 0.00999999977 : f32
    %91 = vector.broadcast %cst_65 : f32 to vector<32x16xf32>
    %92 = arith.mulf %91, %88 : vector<32x16xf32>
    %93 = arith.select %90, %88, %92 : vector<32x16xi1>, vector<32x16xf32>
    %c0_66 = arith.constant 0 : index
    %c0_67 = arith.constant 0 : index
    %94 = vector.load %arg21[%c0_66, %c0_67] : memref<16x2xbf16, #tpu.memory_space<vmem>>, vector<16x2xbf16>
    %95 = arith.truncf %93 : vector<32x16xf32> to vector<32x16xbf16>
    %cst_68 = arith.constant dense<0.000000e+00> : vector<32x2xf32>
    %96 = tpu.matmul %95, %94, %cst_68 {dimension_numbers = #tpu.dot_dimension_numbers<[1], [0], [0], [1], [0, 0, 1, 1], [], []>} : vector<32x16xbf16>, vector<16x2xbf16>, vector<32x2xf32> -> vector<32x2xf32>
    %c0_69 = arith.constant 0 : index
    %c0_70 = arith.constant 0 : index
    %97 = vector.load %arg22[%c0_69, %c0_70] : memref<1x2xf32, #tpu.memory_space<vmem>>, vector<1x2xf32>
    %98 = vector.broadcast %97 : vector<1x2xf32> to vector<32x2xf32>
    %99 = arith.addf %96, %98 : vector<32x2xf32>
    %100 = vector.extract_strided_slice %99 {offsets = [0, 0], sizes = [32, 1], strides = [1, 1]} : vector<32x2xf32> to vector<32x1xf32>
    %101 = arith.negf %100 : vector<32x1xf32>
    %102 = math.exp %101 : vector<32x1xf32>
    %cst_71 = arith.constant 1.000000e+00 : f32
    %103 = vector.broadcast %cst_71 : f32 to vector<32x1xf32>
    %104 = arith.addf %103, %102 : vector<32x1xf32>
    %105 = arith.divf %103, %104 : vector<32x1xf32>
    %106 = vector.extract_strided_slice %99 {offsets = [0, 1], sizes = [32, 1], strides = [1, 1]} : vector<32x2xf32> to vector<32x1xf32>
    %107 = arith.mulf %105, %106 : vector<32x1xf32>
    %c0_72 = arith.constant 0 : index
    %c0_73 = arith.constant 0 : index
    %108 = vector.load %arg23[%c0_72, %c0_73] : memref<32x1xf32, #tpu.memory_space<vmem>>, vector<32x1xf32>
    tpu.vector_store %arg23[%c0_72, %c0_73], %107 {strides = array<i32>} : memref<32x1xf32, #tpu.memory_space<vmem>>, vector<32x1xf32>,
    %c0_74 = arith.constant 0 : index
    %c0_75 = arith.constant 0 : index
    %109 = vector.load %arg24[%c0_74, %c0_75] : memref<32x1xf32, #tpu.memory_space<vmem>>, vector<32x1xf32>
    tpu.vector_store %arg24[%c0_74, %c0_75], %105 {strides = array<i32>} : memref<32x1xf32, #tpu.memory_space<vmem>>, vector<32x1xf32>,
    return
  }
}

</mosaic_0001>

<llo_original>
// kernel: gcn_forward.1
$region0: #{gcn_forward.1}
  #allocation0 [shape = 'u32[]', space=smem, size = 0x4, offset = 0x4, fixed_abs, tag = 'smem constant byte address 0x4 - core index']
  #allocation1 [shape = 'u32[72,128]{1,0:T(1,128)}', space=vmem, size = 0x9000, scoped, tag = 'internal scratch']
  %s0 = inlined_call_operand.vmem [shape: bf16[16,16], index: 0, kind: input, shape index: {}]
  %s1 = inlined_call_operand.vmem [shape: f32[16,8], index: 1, kind: input, shape index: {}]
  %s2 = inlined_call_operand.vmem [shape: bf16[32,16], index: 2, kind: input, shape index: {}]
  %s3 = inlined_call_operand.vmem [shape: bf16[32,16], index: 3, kind: input, shape index: {}]
  %s4 = inlined_call_operand.vmem [shape: f32[32,8], index: 4, kind: input, shape index: {}]
  %s5 = inlined_call_operand.vmem [shape: bf16[8,8], index: 5, kind: input, shape index: {}]
  %s6 = inlined_call_operand.vmem [shape: f32[1,8], index: 6, kind: input, shape index: {}]
  %s7 = inlined_call_operand.vmem [shape: bf16[8,16], index: 7, kind: input, shape index: {}]
  %s8 = inlined_call_operand.vmem [shape: f32[1,16], index: 8, kind: input, shape index: {}]
  %s9 = inlined_call_operand.vmem [shape: bf16[16,32], index: 9, kind: input, shape index: {}]
  %s10 = inlined_call_operand.vmem [shape: f32[1,32], index: 10, kind: input, shape index: {}]
  %s11 = inlined_call_operand.vmem [shape: bf16[8,8], index: 11, kind: input, shape index: {}]
  %s12 = inlined_call_operand.vmem [shape: f32[1,8], index: 12, kind: input, shape index: {}]
  %s13 = inlined_call_operand.vmem [shape: bf16[32,16], index: 13, kind: input, shape index: {}]
  %s14 = inlined_call_operand.vmem [shape: bf16[32,16], index: 14, kind: input, shape index: {}]
  %s15 = inlined_call_operand.vmem [shape: bf16[8,16], index: 15, kind: input, shape index: {}]
  %s16 = inlined_call_operand.vmem [shape: f32[1,16], index: 16, kind: input, shape index: {}]
  %s17 = inlined_call_operand.vmem [shape: bf16[16,8], index: 17, kind: input, shape index: {}]
  %s18 = inlined_call_operand.vmem [shape: f32[1,8], index: 18, kind: input, shape index: {}]
  %s19 = inlined_call_operand.vmem [shape: bf16[8,16], index: 19, kind: input, shape index: {}]
  %s20 = inlined_call_operand.vmem [shape: f32[1,16], index: 20, kind: input, shape index: {}]
  %s21 = inlined_call_operand.vmem [shape: bf16[16,2], index: 21, kind: input, shape index: {}]
  %s22 = inlined_call_operand.vmem [shape: f32[1,2], index: 22, kind: input, shape index: {}]
  %s23 = inlined_call_operand.vmem [shape: f32[32,1], index: 23, kind: output, shape index: {0}]
  %s24 = inlined_call_operand.vmem [shape: f32[32,1], index: 24, kind: output, shape index: {1}]
  %25 = xla_tuple %s23, %s24
  %s26 = sld [smem:[#allocation0]]
  $region110: #{gcn_forward.1} parent=0
    _
  %s28 = ssub.s32 1, %s26
  %s29 = scalar_select 0, %s28, %s26
  // Predicated region
  $region2: #{gcn_forward.1} parent=0 // pred_check
    _
  $region3: #{gcn_forward.1} parent=0 // pred_check_branch
    %31 = sbr.rel (0) target = $region5
  $region4: #{gcn_forward.1} parent=0 // pred_region
    _
  $region5: #{gcn_forward.1} parent=0 // pred_fallthru
    _
  // Predicated region
  $region6: #{gcn_forward.1} parent=0 // pred_check
    _
  $region7: #{gcn_forward.1} parent=0 // pred_check_branch
    %33 = sbr.rel (0) target = $region9
  $region8: #{gcn_forward.1} parent=0 // pred_region
    _
  $region9: #{gcn_forward.1} parent=0 // pred_fallthru
    _
  // Predicated region
  $region10: #{gcn_forward.1} parent=0 // pred_check
    _
  $region11: #{gcn_forward.1} parent=0 // pred_check_branch
    %35 = sbr.rel (0) target = $region13
  $region12: #{gcn_forward.1} parent=0 // pred_region
    _
  $region13: #{gcn_forward.1} parent=0 // pred_fallthru
    _
  // Predicated region
  $region14: #{gcn_forward.1} parent=0 // pred_check
    _
  $region15: #{gcn_forward.1} parent=0 // pred_check_branch
    %37 = sbr.rel (0) target = $region17
  $region16: #{gcn_forward.1} parent=0 // pred_region
    _
  $region17: #{gcn_forward.1} parent=0 // pred_fallthru
    _
  // Predicated region
  $region18: #{gcn_forward.1} parent=0 // pred_check
    _
  $region19: #{gcn_forward.1} parent=0 // pred_check_branch
    %39 = sbr.rel (0) target = $region21
  $region20: #{gcn_forward.1} parent=0 // pred_region
    _
  $region21: #{gcn_forward.1} parent=0 // pred_fallthru
    _
  // Predicated region
  $region22: #{gcn_forward.1} parent=0 // pred_check
    _
  $region23: #{gcn_forward.1} parent=0 // pred_check_branch
    %41 = sbr.rel (0) target = $region25
  $region24: #{gcn_forward.1} parent=0 // pred_region
    _
  $region25: #{gcn_forward.1} parent=0 // pred_fallthru
    _
  // Predicated region
  $region26: #{gcn_forward.1} parent=0 // pred_check
    _
  $region27: #{gcn_forward.1} parent=0 // pred_check_branch
    %43 = sbr.rel (0) target = $region29
  $region28: #{gcn_forward.1} parent=0 // pred_region
    _
  $region29: #{gcn_forward.1} parent=0 // pred_fallthru
    _
  // Predicated region
  $region30: #{gcn_forward.1} parent=0 // pred_check
    _
  $region31: #{gcn_forward.1} parent=0 // pred_check_branch
    %45 = sbr.rel (0) target = $region33
  $region32: #{gcn_forward.1} parent=0 // pred_region
    _
  $region33: #{gcn_forward.1} parent=0 // pred_fallthru
    _
  // Predicated region
  $region34: #{gcn_forward.1} parent=0 // pred_check
    _
  $region35: #{gcn_forward.1} parent=0 // pred_check_branch
    %47 = sbr.rel (0) target = $region37
  $region36: #{gcn_forward.1} parent=0 // pred_region
    _
  $region37: #{gcn_forward.1} parent=0 // pred_fallthru
    _
  // Predicated region
  $region38: #{gcn_forward.1} parent=0 // pred_check
    _
  $region39: #{gcn_forward.1} parent=0 // pred_check_branch
    %49 = sbr.rel (0) target = $region41
  $region40: #{gcn_forward.1} parent=0 // pred_region
    _
  $region41: #{gcn_forward.1} parent=0 // pred_fallthru
    _
  // Predicated region
  $region42: #{gcn_forward.1} parent=0 // pred_check
    _
  $region43: #{gcn_forward.1} parent=0 // pred_check_branch
    %51 = sbr.rel (0) target = $region45
  $region44: #{gcn_forward.1} parent=0 // pred_region
    _
  $region45: #{gcn_forward.1} parent=0 // pred_fallthru
    _
  // Predicated region
  $region46: #{gcn_forward.1} parent=0 // pred_check
    _
  $region47: #{gcn_forward.1} parent=0 // pred_check_branch
    %53 = sbr.rel (0) target = $region49
  $region48: #{gcn_forward.1} parent=0 // pred_region
    _
  $region49: #{gcn_forward.1} parent=0 // pred_fallthru
    _
  // Predicated region
  $region50: #{gcn_forward.1} parent=0 // pred_check
    _
  $region51: #{gcn_forward.1} parent=0 // pred_check_branch
    %55 = sbr.rel (0) target = $region53
  $region52: #{gcn_forward.1} parent=0 // pred_region
    _
  $region53: #{gcn_forward.1} parent=0 // pred_fallthru
    _
  // Predicated region
  $region54: #{gcn_forward.1} parent=0 // pred_check
    _
  $region55: #{gcn_forward.1} parent=0 // pred_check_branch
    %57 = sbr.rel (0) target = $region57
  $region56: #{gcn_forward.1} parent=0 // pred_region
    _
  $region57: #{gcn_forward.1} parent=0 // pred_fallthru
    _
  // Predicated region
  $region58: #{gcn_forward.1} parent=0 // pred_check
    _
  $region59: #{gcn_forward.1} parent=0 // pred_check_branch
    %59 = sbr.rel (0) target = $region61
  $region60: #{gcn_forward.1} parent=0 // pred_region
    _
  $region61: #{gcn_forward.1} parent=0 // pred_fallthru
    _
  // Predicated region
  $region62: #{gcn_forward.1} parent=0 // pred_check
    _
  $region63: #{gcn_forward.1} parent=0 // pred_check_branch
    %61 = sbr.rel (0) target = $region65
  $region64: #{gcn_forward.1} parent=0 // pred_region
    _
  $region65: #{gcn_forward.1} parent=0 // pred_fallthru
    _
  // Predicated region
  $region66: #{gcn_forward.1} parent=0 // pred_check
    _
  $region67: #{gcn_forward.1} parent=0 // pred_check_branch
    %63 = sbr.rel (0) target = $region69
  $region68: #{gcn_forward.1} parent=0 // pred_region
    _
  $region69: #{gcn_forward.1} parent=0 // pred_fallthru
    _
  // Predicated region
  $region70: #{gcn_forward.1} parent=0 // pred_check
    _
  $region71: #{gcn_forward.1} parent=0 // pred_check_branch
    %65 = sbr.rel (0) target = $region73
  $region72: #{gcn_forward.1} parent=0 // pred_region
    _
  $region73: #{gcn_forward.1} parent=0 // pred_fallthru
    _
  // Predicated region
  $region74: #{gcn_forward.1} parent=0 // pred_check
    _
  $region75: #{gcn_forward.1} parent=0 // pred_check_branch
    %67 = sbr.rel (0) target = $region77
  $region76: #{gcn_forward.1} parent=0 // pred_region
    _
  $region77: #{gcn_forward.1} parent=0 // pred_fallthru
    _
  // Predicated region
  $region78: #{gcn_forward.1} parent=0 // pred_check
    _
  $region79: #{gcn_forward.1} parent=0 // pred_check_branch
    %69 = sbr.rel (0) target = $region81
  $region80: #{gcn_forward.1} parent=0 // pred_region
    _
  $region81: #{gcn_forward.1} parent=0 // pred_fallthru
    _
  // Predicated region
  $region82: #{gcn_forward.1} parent=0 // pred_check
    _
  $region83: #{gcn_forward.1} parent=0 // pred_check_branch
    %71 = sbr.rel (0) target = $region85
  $region84: #{gcn_forward.1} parent=0 // pred_region
    _
  $region85: #{gcn_forward.1} parent=0 // pred_fallthru
    _
  // Predicated region
  $region86: #{gcn_forward.1} parent=0 // pred_check
    _
  $region87: #{gcn_forward.1} parent=0 // pred_check_branch
    %73 = sbr.rel (0) target = $region89
  $region88: #{gcn_forward.1} parent=0 // pred_region
    _
  $region89: #{gcn_forward.1} parent=0 // pred_fallthru
    _
  // Predicated region
  $region90: #{gcn_forward.1} parent=0 // pred_check
    _
  $region91: #{gcn_forward.1} parent=0 // pred_check_branch
    %75 = sbr.rel (0) target = $region93
  $region92: #{gcn_forward.1} parent=0 // pred_region
    _
  $region93: #{gcn_forward.1} parent=0 // pred_fallthru
    _
  %v77 = vld [vmem:[%s0] sm:$0xf]
  %v78 = vld [vmem:[%s0 + $0x4] sm:$0xf]
  %v79 = vld [vmem:[%s1] sm:$0xff]
  %v80 = vld [vmem:[%s1 + $0x8] sm:$0xff]
  %v81 = vld [vmem:[%s5] sm:$0xf]
  %v82 = vpack.c.bf16 %v80, %v79
  %vm83 = vcmask 64512
  %v85 = vsel %vm83, %v82, 0
  %vm87 = vcmask 1043456
  %v89 = vsel %vm87, %v81, 0
  %91 = vmatpush.bf16.msra.mxu0 0
  %92 = vmatpush.bf16.msra.mxu0 0
  %93 = vmatpush.bf16.msra.mxu0 0
  %94 = vmatpush.bf16.msra.mxu0 0
  %95 = vmatpush.bf16.msra.mxu0 0
  %96 = vmatpush.bf16.msra.mxu0 0
  %97 = vmatpush.bf16.msra.mxu0 0
  %98 = vmatpush.bf16.msra.mxu0 %v89
  %99 = vmatmul.bf16.gmra.mxu0 %v85
  %v100 = vpop.f32.mrf.mxu0
  %v101 = vadd.f32 0.0, %v100
  %v102 = vpop.f32.mrf.mxu0
  %v103 = vadd.f32 0.0, %v102
  %104 = vdwg.mxu0
  %v105 = vpack.c.bf16 %v103, %v101
  %v106 = vld [vmem:[%s6] sm:$0x1]
  %v108 = vperm.slane %v106, 0
  %v112 = vunpack.c.l.b16 %v77
  %v113 = vunpack.c.l.b16 %v78
  %v114 = vpack.c.b16 %v113, %v112
  %vm115 = vcmask 130048
  %v117 = vsel %vm115, %v114, 0
  %119 = vmatpush.bf16.msra.mxu0 0
  %120 = vmatpush.bf16.msra.mxu0 0
  %121 = vmatpush.bf16.msra.mxu0 0
  %122 = vmatpush.bf16.msra.mxu0 0
  %123 = vmatpush.bf16.msra.mxu0 0
  %124 = vmatpush.bf16.msra.mxu0 0
  %125 = vmatpush.bf16.msra.mxu0 0
  %126 = vmatpush.bf16.msra.mxu0 %v105
  %127 = vmatmul.bf16.gmra.mxu0 %v117
  %v128 = vpop.f32.mrf.mxu0
  %v129 = vadd.f32 %v108, %v128
  %v130 = vpop.f32.mrf.mxu0
  %v131 = vadd.f32 %v108, %v130
  %132 = vdwg.mxu0
  %vm133 = vcmp.gt.f32.partialorder %v129, 0.0
  %vm134 = vcmp.gt.f32.partialorder %v131, 0.0
  %v135 = vmul.f32 %v129, 0.01
  %v136 = vmul.f32 %v131, 0.01
  %v137 = vsel %vm133, %v129, %v135
  %v138 = vsel %vm134, %v131, %v136
  %v139 = vld [vmem:[%s7] sm:$0xf]
  %v140 = vpack.c.bf16 %v138, %v137
  %v142 = vsel %vm83, %v140, 0
  %v145 = vsel %vm87, %v139, 0
  %147 = vmatpush.bf16.msra.mxu0 0
  %148 = vmatpush.bf16.msra.mxu0 0
  %149 = vmatpush.bf16.msra.mxu0 0
  %150 = vmatpush.bf16.msra.mxu0 0
  %151 = vmatpush.bf16.msra.mxu0 0
  %152 = vmatpush.bf16.msra.mxu0 0
  %153 = vmatpush.bf16.msra.mxu0 0
  %154 = vmatpush.bf16.msra.mxu0 %v145
  %155 = vmatmul.bf16.gmra.mxu0 %v142
  %v156 = vpop.f32.mrf.mxu0
  %v157 = vadd.f32 0.0, %v156
  %v158 = vpop.f32.mrf.mxu0
  %v159 = vadd.f32 0.0, %v158
  %160 = vdwg.mxu0
  %v161 = vpack.c.bf16 %v159, %v157
  %v162 = vld [vmem:[%s8] sm:$0x1]
  %v164 = vperm.slane %v162, 0
  %166 = vmatpush.bf16.msra.mxu0 0
  %167 = vmatpush.bf16.msra.mxu0 0
  %168 = vmatpush.bf16.msra.mxu0 0
  %169 = vmatpush.bf16.msra.mxu0 0
  %170 = vmatpush.bf16.msra.mxu0 0
  %171 = vmatpush.bf16.msra.mxu0 0
  %172 = vmatpush.bf16.msra.mxu0 0
  %173 = vmatpush.bf16.msra.mxu0 %v161
  %174 = vmatmul.bf16.gmra.mxu0 %v117
  %v175 = vpop.f32.mrf.mxu0
  %v176 = vadd.f32 %v164, %v175
  %v177 = vpop.f32.mrf.mxu0
  %v178 = vadd.f32 %v164, %v177
  %179 = vdwg.mxu0
  %vm180 = vcmp.gt.f32.partialorder %v176, 0.0
  %vm181 = vcmp.gt.f32.partialorder %v178, 0.0
  %v182 = vmul.f32 %v176, 0.01
  %v183 = vmul.f32 %v178, 0.01
  %v184 = vsel %vm180, %v176, %v182
  %v185 = vsel %vm181, %v178, %v183
  %v186 = vld [vmem:[%s9] sm:$0xf]
  %v187 = vld [vmem:[%s9 + $0x4] sm:$0xf]
  %v188 = vpack.c.bf16 %v185, %v184
  %v191 = vunpack.c.l.b16 %v186
  %v192 = vunpack.c.l.b16 %v187
  %v193 = vpack.c.b16 %v192, %v191
  %v196 = vsel %vm115, %v188, 0
  %198 = vmatpush.bf16.msra.mxu0 0
  %199 = vmatpush.bf16.msra.mxu0 0
  %200 = vmatpush.bf16.msra.mxu0 0
  %201 = vmatpush.bf16.msra.mxu0 0
  %202 = vmatpush.bf16.msra.mxu0 0
  %203 = vmatpush.bf16.msra.mxu0 0
  %204 = vmatpush.bf16.msra.mxu0 0
  %205 = vmatpush.bf16.msra.mxu0 %v193
  %206 = vmatmul.bf16.gmra.mxu0 %v196
  %v207 = vpop.f32.mrf.mxu0
  %v208 = vadd.f32 0.0, %v207
  %v209 = vpop.f32.mrf.mxu0
  %v210 = vadd.f32 0.0, %v209
  %211 = vdwg.mxu0
  %v212 = vpack.c.bf16 %v210, %v208
  %v213 = vld [vmem:[%s10] sm:$0x1]
  %v215 = vperm.slane %v213, 0
  %217 = vmatpush.bf16.msra.mxu0 0
  %218 = vmatpush.bf16.msra.mxu0 0
  %219 = vmatpush.bf16.msra.mxu0 0
  %220 = vmatpush.bf16.msra.mxu0 0
  %221 = vmatpush.bf16.msra.mxu0 0
  %222 = vmatpush.bf16.msra.mxu0 0
  %223 = vmatpush.bf16.msra.mxu0 0
  %224 = vmatpush.bf16.msra.mxu0 %v212
  %225 = vmatmul.bf16.gmra.mxu0 %v117
  %v226 = vpop.f32.mrf.mxu0
  %v227 = vadd.f32 %v215, %v226
  %v228 = vpop.f32.mrf.mxu0
  %v229 = vadd.f32 %v215, %v228
  %230 = vdwg.mxu0
  %vm231 = vcmp.gt.f32.partialorder %v227, 0.0
  %vm232 = vcmp.gt.f32.partialorder %v229, 0.0
  %v233 = vmul.f32 %v227, 0.01
  %v234 = vmul.f32 %v229, 0.01
  %v235 = vsel %vm231, %v227, %v233
  %v236 = vsel %vm232, %v229, %v234
  %v237 = vld [vmem:[%s4] sm:$0xff]
  %v238 = vld [vmem:[%s4 + $0x8] sm:$0xff]
  %v239 = vld [vmem:[%s4 + $0x10] sm:$0xff]
  %v240 = vld [vmem:[%s4 + $0x18] sm:$0xff]
  %v241 = vld [vmem:[%s11] sm:$0xf]
  %v242 = vpack.c.bf16 %v238, %v237
  %v243 = vpack.c.bf16 %v240, %v239
  %v244 = vld [vmem:[%s12] sm:$0x1]
  %v246 = vperm.slane %v244, 0
  %v249 = vsel %vm83, %v242, 0
  %v252 = vsel %vm83, %v243, 0
  %v255 = vsel %vm87, %v241, 0
  %257 = vmatpush.bf16.msra.mxu0 0
  %258 = vmatpush.bf16.msra.mxu0 0
  %259 = vmatpush.bf16.msra.mxu0 0
  %260 = vmatpush.bf16.msra.mxu0 0
  %261 = vmatpush.bf16.msra.mxu0 0
  %262 = vmatpush.bf16.msra.mxu0 0
  %263 = vmatpush.bf16.msra.mxu0 0
  %264 = vmatpush.bf16.msra.mxu0 %v255
  %265 = vmatmul.bf16.gmra.mxu0 %v249
  %v266 = vpop.f32.mrf.mxu0
  %v267 = vadd.f32 %v246, %v266
  %v268 = vpop.f32.mrf.mxu0
  %v269 = vadd.f32 %v246, %v268
  %270 = vmatmul.bf16.gmra.mxu0 %v252
  %v271 = vpop.f32.mrf.mxu0
  %v272 = vadd.f32 %v246, %v271
  %v273 = vpop.f32.mrf.mxu0
  %v274 = vadd.f32 %v246, %v273
  %275 = vdwg.mxu0
  %vm276 = vcmp.gt.f32.partialorder %v267, 0.0
  %vm277 = vcmp.gt.f32.partialorder %v269, 0.0
  %vm278 = vcmp.gt.f32.partialorder %v272, 0.0
  %vm279 = vcmp.gt.f32.partialorder %v274, 0.0
  %v280 = vmul.f32 %v267, 0.01
  %v281 = vmul.f32 %v269, 0.01
  %v282 = vmul.f32 %v272, 0.01
  %v283 = vmul.f32 %v274, 0.01
  %v284 = vsel %vm276, %v267, %v280
  %v285 = vsel %vm277, %v269, %v281
  %v286 = vsel %vm278, %v272, %v282
  %v287 = vsel %vm279, %v274, %v283
  %v288 = vpack.c.bf16 %v236, %v235
  %v289 = vld [vmem:[%s2] sm:$0xf]
  %v290 = vld [vmem:[%s2 + $0x4] sm:$0xf]
  %v291 = vld [vmem:[%s2 + $0x8] sm:$0xf]
  %v292 = vld [vmem:[%s2 + $0xc] sm:$0xf]
  %v297 = vunpack.c.l.b16 %v289
  %v298 = vunpack.c.l.b16 %v290
  %v299 = vunpack.c.l.b16 %v291
  %v300 = vunpack.c.l.b16 %v292
  %v301 = vpack.c.b16 %v298, %v297
  %v302 = vpack.c.b16 %v300, %v299
  %v304 = vsel %vm115, %v301, 0
  %v307 = vsel %vm115, %v302, 0
  %309 = vmatpush.bf16.msra.mxu0 0
  %310 = vmatpush.bf16.msra.mxu0 0
  %311 = vmatpush.bf16.msra.mxu0 0
  %312 = vmatpush.bf16.msra.mxu0 0
  %313 = vmatpush.bf16.msra.mxu0 0
  %314 = vmatpush.bf16.msra.mxu0 0
  %315 = vmatpush.bf16.msra.mxu0 0
  %316 = vmatpush.bf16.msra.mxu0 %v288
  %317 = vmatmul.bf16.gmra.mxu0 %v304
  %v318 = vpop.f32.mrf.mxu0
  %v319 = vadd.f32 0.0, %v318
  %v320 = vpop.f32.mrf.mxu0
  %v321 = vadd.f32 0.0, %v320
  %322 = vmatmul.bf16.gmra.mxu0 %v307
  %v323 = vpop.f32.mrf.mxu0
  %v324 = vadd.f32 0.0, %v323
  %v325 = vpop.f32.mrf.mxu0
  %v326 = vadd.f32 0.0, %v325
  %327 = vdwg.mxu0
  %v328 = vld [vmem:[%s3] sm:$0xf]
  %v329 = vld [vmem:[%s3 + $0x4] sm:$0xf]
  %v330 = vld [vmem:[%s3 + $0x8] sm:$0xf]
  %v331 = vld [vmem:[%s3 + $0xc] sm:$0xf]
  %v336 = vunpack.c.l.b16 %v328
  %v337 = vunpack.c.l.b16 %v329
  %v338 = vunpack.c.l.b16 %v330
  %v339 = vunpack.c.l.b16 %v331
  %v340 = vpack.c.b16 %v337, %v336
  %v341 = vpack.c.b16 %v339, %v338
  %v343 = vsel %vm115, %v340, 0
  %v346 = vsel %vm115, %v341, 0
  %348 = vmatpush.bf16.msra.mxu0 0
  %349 = vmatpush.bf16.msra.mxu0 0
  %350 = vmatpush.bf16.msra.mxu0 0
  %351 = vmatpush.bf16.msra.mxu0 0
  %352 = vmatpush.bf16.msra.mxu0 0
  %353 = vmatpush.bf16.msra.mxu0 0
  %354 = vmatpush.bf16.msra.mxu0 0
  %355 = vmatpush.bf16.msra.mxu0 %v288
  %356 = vmatmul.bf16.gmra.mxu0 %v343
  %v357 = vpop.f32.mrf.mxu0
  %v358 = vadd.f32 0.0, %v357
  %v359 = vpop.f32.mrf.mxu0
  %v360 = vadd.f32 0.0, %v359
  %361 = vmatmul.bf16.gmra.mxu0 %v346
  %v362 = vpop.f32.mrf.mxu0
  %v363 = vadd.f32 0.0, %v362
  %v364 = vpop.f32.mrf.mxu0
  %v365 = vadd.f32 0.0, %v364
  %366 = vdwg.mxu0
  %v367 = vld [vmem:[%s13] sm:$0xf]
  %v368 = vld [vmem:[%s13 + $0x4] sm:$0xf]
  %v369 = vld [vmem:[%s13 + $0x8] sm:$0xf]
  %v370 = vld [vmem:[%s13 + $0xc] sm:$0xf]
  %v371 = vpack.c.bf16 %v321, %v319
  %v372 = vpack.c.bf16 %v326, %v324
  %v373 = vld [vmem:[%s14] sm:$0xf]
  %v374 = vld [vmem:[%s14 + $0x4] sm:$0xf]
  %v375 = vld [vmem:[%s14 + $0x8] sm:$0xf]
  %v376 = vld [vmem:[%s14 + $0xc] sm:$0xf]
  %v377 = vpack.c.bf16 %v360, %v358
  %v378 = vpack.c.bf16 %v365, %v363
  %v383 = vunpack.c.l.b16 %v373
  %v384 = vunpack.c.l.b16 %v374
  %v385 = vunpack.c.l.b16 %v375
  %v386 = vunpack.c.l.b16 %v376
  %v387 = vpack.c.b16 %v384, %v383
  %v388 = vpack.c.b16 %v386, %v385
  %vm391 = vcmask 261120
  %v393 = vsel %vm391, %v377, 0
  %v396 = vsel %vm391, %v378, 0
  %398 = vmatpush.bf16.msra.mxu0 0
  %399 = vmatpush.bf16.msra.mxu0 0
  %400 = vmatpush.bf16.msra.mxu0 0
  %401 = vmatpush.bf16.msra.mxu0 0
  %402 = vmatpush.bf16.msra.mxu0 0
  %403 = vmatpush.bf16.msra.mxu0 0
  %404 = vmatpush.bf16.msra.mxu0 %v388
  %405 = vmatpush.bf16.msra.mxu0 %v387
  %406 = vmatmul.bf16.gmra.mxu0 %v393
  %v407 = vpop.f32.mrf.mxu0
  %v408 = vadd.f32 0.0, %v407
  %v409 = vpop.f32.mrf.mxu0
  %v410 = vadd.f32 0.0, %v409
  %411 = vmatmul.bf16.gmra.mxu0 %v396
  %v412 = vpop.f32.mrf.mxu0
  %v413 = vadd.f32 0.0, %v412
  %v414 = vpop.f32.mrf.mxu0
  %v415 = vadd.f32 0.0, %v414
  %416 = vdwg.mxu0
  %v421 = vunpack.c.l.b16 %v367
  %v422 = vunpack.c.l.b16 %v368
  %v423 = vunpack.c.l.b16 %v369
  %v424 = vunpack.c.l.b16 %v370
  %v425 = vpack.c.b16 %v422, %v421
  %v426 = vpack.c.b16 %v424, %v423
  %v430 = vsel %vm391, %v371, 0
  %v433 = vsel %vm391, %v372, 0
  %435 = vmatpush.bf16.msra.mxu0 0
  %436 = vmatpush.bf16.msra.mxu0 0
  %437 = vmatpush.bf16.msra.mxu0 0
  %438 = vmatpush.bf16.msra.mxu0 0
  %439 = vmatpush.bf16.msra.mxu0 0
  %440 = vmatpush.bf16.msra.mxu0 0
  %441 = vmatpush.bf16.msra.mxu0 %v426
  %442 = vmatpush.bf16.msra.mxu0 %v425
  %443 = vmatmul.bf16.gmra.mxu0 %v430
  %v444 = vpop.f32.mrf.mxu0
  %v445 = vadd.f32 %v408, %v444
  %v446 = vpop.f32.mrf.mxu0
  %v447 = vadd.f32 %v410, %v446
  %448 = vmatmul.bf16.gmra.mxu0 %v433
  %v449 = vpop.f32.mrf.mxu0
  %v450 = vadd.f32 %v413, %v449
  %v451 = vpop.f32.mrf.mxu0
  %v452 = vadd.f32 %v415, %v451
  %453 = vdwg.mxu0
  %v454 = vld [vmem:[%s15] sm:$0xf]
  %v455 = vpack.c.bf16 %v285, %v284
  %v456 = vpack.c.bf16 %v287, %v286
  %v458 = vsel %vm83, %v455, 0
  %v461 = vsel %vm83, %v456, 0
  %v464 = vsel %vm87, %v454, 0
  %466 = vmatpush.bf16.msra.mxu0 0
  %467 = vmatpush.bf16.msra.mxu0 0
  %468 = vmatpush.bf16.msra.mxu0 0
  %469 = vmatpush.bf16.msra.mxu0 0
  %470 = vmatpush.bf16.msra.mxu0 0
  %471 = vmatpush.bf16.msra.mxu0 0
  %472 = vmatpush.bf16.msra.mxu0 0
  %473 = vmatpush.bf16.msra.mxu0 %v464
  %474 = vmatmul.bf16.gmra.mxu0 %v458
  %v475 = vpop.f32.mrf.mxu0
  %v476 = vadd.f32 0.0, %v475
  %v477 = vpop.f32.mrf.mxu0
  %v478 = vadd.f32 0.0, %v477
  %479 = vmatmul.bf16.gmra.mxu0 %v461
  %v480 = vpop.f32.mrf.mxu0
  %v481 = vadd.f32 0.0, %v480
  %v482 = vpop.f32.mrf.mxu0
  %v483 = vadd.f32 0.0, %v482
  %484 = vdwg.mxu0
  %v485 = vadd.f32 %v445, %v476
  %v486 = vadd.f32 %v447, %v478
  %v487 = vadd.f32 %v450, %v481
  %v488 = vadd.f32 %v452, %v483
  %v489 = vld [vmem:[%s16] sm:$0x1]
  %v491 = vperm.slane %v489, 0
  %v493 = vadd.f32 %v485, %v491
  %v494 = vadd.f32 %v486, %v491
  %v495 = vadd.f32 %v487, %v491
  %v496 = vadd.f32 %v488, %v491
  %vm497 = vcmp.gt.f32.partialorder %v493, 0.0
  %vm498 = vcmp.gt.f32.partialorder %v494, 0.0
  %vm499 = vcmp.gt.f32.partialorder %v495, 0.0
  %vm500 = vcmp.gt.f32.partialorder %v496, 0.0
  %v501 = vmul.f32 %v493, 0.01
  %v502 = vmul.f32 %v494, 0.01
  %v503 = vmul.f32 %v495, 0.01
  %v504 = vmul.f32 %v496, 0.01
  %v505 = vsel %vm497, %v493, %v501
  %v506 = vsel %vm498, %v494, %v502
  %v507 = vsel %vm499, %v495, %v503
  %v508 = vsel %vm500, %v496, %v504
  %v509 = vld [vmem:[%s17] sm:$0xf]
  %v510 = vld [vmem:[%s17 + $0x4] sm:$0xf]
  %v511 = vpack.c.bf16 %v506, %v505
  %v512 = vpack.c.bf16 %v508, %v507
  %v513 = vld [vmem:[%s18] sm:$0x1]
  %v515 = vperm.slane %v513, 0
  %v519 = vunpack.c.l.b16 %v509
  %v520 = vunpack.c.l.b16 %v510
  %v521 = vpack.c.b16 %v520, %v519
  %v524 = vsel %vm115, %v511, 0
  %v527 = vsel %vm115, %v512, 0
  %529 = vmatpush.bf16.msra.mxu0 0
  %530 = vmatpush.bf16.msra.mxu0 0
  %531 = vmatpush.bf16.msra.mxu0 0
  %532 = vmatpush.bf16.msra.mxu0 0
  %533 = vmatpush.bf16.msra.mxu0 0
  %534 = vmatpush.bf16.msra.mxu0 0
  %535 = vmatpush.bf16.msra.mxu0 0
  %536 = vmatpush.bf16.msra.mxu0 %v521
  %537 = vmatmul.bf16.gmra.mxu0 %v524
  %v538 = vpop.f32.mrf.mxu0
  %v539 = vadd.f32 %v515, %v538
  %v540 = vpop.f32.mrf.mxu0
  %v541 = vadd.f32 %v515, %v540
  %542 = vmatmul.bf16.gmra.mxu0 %v527
  %v543 = vpop.f32.mrf.mxu0
  %v544 = vadd.f32 %v515, %v543
  %v545 = vpop.f32.mrf.mxu0
  %v546 = vadd.f32 %v515, %v545
  %547 = vdwg.mxu0
  %v548 = vld [vmem:[%s19] sm:$0xf]
  %v549 = vpack.c.bf16 %v541, %v539
  %v550 = vpack.c.bf16 %v546, %v544
  %v551 = vld [vmem:[%s20] sm:$0x1]
  %v553 = vperm.slane %v551, 0
  %v556 = vsel %vm83, %v549, 0
  %v559 = vsel %vm83, %v550, 0
  %v562 = vsel %vm87, %v548, 0
  %564 = vmatpush.bf16.msra.mxu0 0
  %565 = vmatpush.bf16.msra.mxu0 0
  %566 = vmatpush.bf16.msra.mxu0 0
  %567 = vmatpush.bf16.msra.mxu0 0
  %568 = vmatpush.bf16.msra.mxu0 0
  %569 = vmatpush.bf16.msra.mxu0 0
  %570 = vmatpush.bf16.msra.mxu0 0
  %571 = vmatpush.bf16.msra.mxu0 %v562
  %572 = vmatmul.bf16.gmra.mxu0 %v556
  %v573 = vpop.f32.mrf.mxu0
  %v574 = vadd.f32 %v553, %v573
  %v575 = vpop.f32.mrf.mxu0
  %v576 = vadd.f32 %v553, %v575
  %577 = vmatmul.bf16.gmra.mxu0 %v559
  %v578 = vpop.f32.mrf.mxu0
  %v579 = vadd.f32 %v553, %v578
  %v580 = vpop.f32.mrf.mxu0
  %v581 = vadd.f32 %v553, %v580
  %582 = vdwg.mxu0
  %vm583 = vcmp.gt.f32.partialorder %v574, 0.0
  %vm584 = vcmp.gt.f32.partialorder %v576, 0.0
  %vm585 = vcmp.gt.f32.partialorder %v579, 0.0
  %vm586 = vcmp.gt.f32.partialorder %v581, 0.0
  %v587 = vmul.f32 %v574, 0.01
  %v588 = vmul.f32 %v576, 0.01
  %v589 = vmul.f32 %v579, 0.01
  %v590 = vmul.f32 %v581, 0.01
  %v591 = vsel %vm583, %v574, %v587
  %v592 = vsel %vm584, %v576, %v588
  %v593 = vsel %vm585, %v579, %v589
  %v594 = vsel %vm586, %v581, %v590
  %v595 = vld [vmem:[%s21] sm:$0xf]
  %v596 = vld [vmem:[%s21 + $0x4] sm:$0xf]
  %v597 = vpack.c.bf16 %v592, %v591
  %v598 = vpack.c.bf16 %v594, %v593
  %v599 = vld [vmem:[%s22] sm:$0x1]
  %v601 = vperm.slane %v599, 0
  %v605 = vunpack.c.l.b16 %v595
  %v606 = vunpack.c.l.b16 %v596
  %v607 = vpack.c.b16 %v606, %v605
  %v610 = vsel %vm115, %v597, 0
  %v613 = vsel %vm115, %v598, 0
  %615 = vmatpush.bf16.msra.mxu0 0
  %616 = vmatpush.bf16.msra.mxu0 0
  %617 = vmatpush.bf16.msra.mxu0 0
  %618 = vmatpush.bf16.msra.mxu0 0
  %619 = vmatpush.bf16.msra.mxu0 0
  %620 = vmatpush.bf16.msra.mxu0 0
  %621 = vmatpush.bf16.msra.mxu0 0
  %622 = vmatpush.bf16.msra.mxu0 %v607
  %623 = vmatmul.bf16.gmra.mxu0 %v610
  %v624 = vpop.f32.mrf.mxu0
  %v625 = vadd.f32 %v601, %v624
  %v626 = vpop.f32.mrf.mxu0
  %v627 = vadd.f32 %v601, %v626
  %628 = vmatmul.bf16.gmra.mxu0 %v613
  %v629 = vpop.f32.mrf.mxu0
  %v630 = vadd.f32 %v601, %v629
  %v631 = vpop.f32.mrf.mxu0
  %v632 = vadd.f32 %v601, %v631
  %633 = vdwg.mxu0
  %v634 = vxor.u32 %v625, 2147483648
  %v635 = vxor.u32 %v627, 2147483648
  %v636 = vxor.u32 %v630, 2147483648
  %v637 = vxor.u32 %v632, 2147483648
  %v638 = vmul.f32 %v634, 1.442695
  %v639 = vpow.pop %v638
  %v640 = vmul.f32 %v635, 1.442695
  %v641 = vpow.pop %v640
  %v642 = vmul.f32 %v636, 1.442695
  %v643 = vpow.pop %v642
  %v644 = vmul.f32 %v637, 1.442695
  %v645 = vpow.pop %v644
  %v646 = vadd.f32 %v639, 1.0
  %v647 = vadd.f32 %v641, 1.0
  %v648 = vadd.f32 %v643, 1.0
  %v649 = vadd.f32 %v645, 1.0
  %v650 = vrcp.pop %v646
  %v651 = vmul.f32 %v646, %v650
  %v652 = vsub.f32 1.0, %v651
  %v653 = vmul.f32 %v650, %v652
  %v654 = vadd.f32 %v650, %v653
  %vm655 = vweird.f32 %v646
  %vm656 = vweird.f32 %v650
  %vm657 = vmor %vm655, %vm656
  %v658 = vsel %vm657, %v650, %v654
  %v659 = vand.u32 2147483647, %v646
  %vm660 = vcmp.eq.f32.partialorder %v659, 8.507059e+37
  %v661 = vand.u32 %v646, 2147483648
  %v662 = vor.u32 1.1754944e-38, %v661
  %v663 = vsel %vm660, %v662, %v658
  %v664 = vmul.f32 1.0, %v663
  %v665 = vrcp.pop %v647
  %v666 = vmul.f32 %v647, %v665
  %v667 = vsub.f32 1.0, %v666
  %v668 = vmul.f32 %v665, %v667
  %v669 = vadd.f32 %v665, %v668
  %vm670 = vweird.f32 %v647
  %vm671 = vweird.f32 %v665
  %vm672 = vmor %vm670, %vm671
  %v673 = vsel %vm672, %v665, %v669
  %v674 = vand.u32 2147483647, %v647
  %vm675 = vcmp.eq.f32.partialorder %v674, 8.507059e+37
  %v676 = vand.u32 %v647, 2147483648
  %v677 = vor.u32 1.1754944e-38, %v676
  %v678 = vsel %vm675, %v677, %v673
  %v679 = vmul.f32 1.0, %v678
  %v680 = vrcp.pop %v648
  %v681 = vmul.f32 %v648, %v680
  %v682 = vsub.f32 1.0, %v681
  %v683 = vmul.f32 %v680, %v682
  %v684 = vadd.f32 %v680, %v683
  %vm685 = vweird.f32 %v648
  %vm686 = vweird.f32 %v680
  %vm687 = vmor %vm685, %vm686
  %v688 = vsel %vm687, %v680, %v684
  %v689 = vand.u32 2147483647, %v648
  %vm690 = vcmp.eq.f32.partialorder %v689, 8.507059e+37
  %v691 = vand.u32 %v648, 2147483648
  %v692 = vor.u32 1.1754944e-38, %v691
  %v693 = vsel %vm690, %v692, %v688
  %v694 = vmul.f32 1.0, %v693
  %v695 = vrcp.pop %v649
  %v696 = vmul.f32 %v649, %v695
  %v697 = vsub.f32 1.0, %v696
  %v698 = vmul.f32 %v695, %v697
  %v699 = vadd.f32 %v695, %v698
  %vm700 = vweird.f32 %v649
  %vm701 = vweird.f32 %v695
  %vm702 = vmor %vm700, %vm701
  %v703 = vsel %vm702, %v695, %v699
  %v704 = vand.u32 2147483647, %v649
  %vm705 = vcmp.eq.f32.partialorder %v704, 8.507059e+37
  %v706 = vand.u32 %v649, 2147483648
  %v707 = vor.u32 1.1754944e-38, %v706
  %v708 = vsel %vm705, %v707, %v703
  %v709 = vmul.f32 1.0, %v708
  %714 = vrot.lane.b32.xlu0 %v625, 127
  %v715 = vpop.permute.xlu0 %714
  %716 = vrot.lane.b32.xlu0 %v627, 127
  %v717 = vpop.permute.xlu0 %716
  %718 = vrot.lane.b32.xlu0 %v630, 127
  %v719 = vpop.permute.xlu0 %718
  %720 = vrot.lane.b32.xlu0 %v632, 127
  %v721 = vpop.permute.xlu0 %720
  %v726 = vmul.f32 %v664, %v715
  %v727 = vmul.f32 %v679, %v717
  %v728 = vmul.f32 %v694, %v719
  %v729 = vmul.f32 %v709, %v721
  %vm730 = vcmask 7168
  %731 = vst.msk [vmem:[%s23] sm:$0xff] %vm730, %v726
  %732 = vst.msk [vmem:[%s23 + $0x8] sm:$0xff] %vm730, %v727
  %733 = vst.msk [vmem:[%s23 + $0x10] sm:$0xff] %vm730, %v728
  %734 = vst.msk [vmem:[%s23 + $0x18] sm:$0xff] %vm730, %v729
  %735 = vst.msk [vmem:[%s24] sm:$0xff] %vm730, %v664
  %736 = vst.msk [vmem:[%s24 + $0x8] sm:$0xff] %vm730, %v679
  %737 = vst.msk [vmem:[%s24 + $0x10] sm:$0xff] %vm730, %v694
  %738 = vst.msk [vmem:[%s24 + $0x18] sm:$0xff] %vm730, %v709
  // Predicated region
  $region94: #{gcn_forward.1} parent=0 // pred_check
    _
  $region95: #{gcn_forward.1} parent=0 // pred_check_branch
    %740 = sbr.rel (0) target = $region97
  $region96: #{gcn_forward.1} parent=0 // pred_region
    _
  $region97: #{gcn_forward.1} parent=0 // pred_fallthru
    _
  // Predicated region
  $region98: #{gcn_forward.1} parent=0 // pred_check
    _
  $region99: #{gcn_forward.1} parent=0 // pred_check_branch
    %742 = sbr.rel (0) target = $region101
  $region100: #{gcn_forward.1} parent=0 // pred_region
    _
  $region101: #{gcn_forward.1} parent=0 // pred_fallthru
    _
  // Predicated region
  $region102: #{gcn_forward.1} parent=0 // pred_check
    _
  $region103: #{gcn_forward.1} parent=0 // pred_check_branch
    %744 = sbr.rel (0) target = $region105
  $region104: #{gcn_forward.1} parent=0 // pred_region
    _
  $region105: #{gcn_forward.1} parent=0 // pred_fallthru
    _
  // Predicated region
  $region106: #{gcn_forward.1} parent=0 // pred_check
    _
  $region107: #{gcn_forward.1} parent=0 // pred_check_branch
    %746 = sbr.rel (0) target = $region109
  $region108: #{gcn_forward.1} parent=0 // pred_region
    _
  $region109: #{gcn_forward.1} parent=0 // pred_fallthru
    _

</llo_original>
